<compile_context>
chip_gen: v7x
topology: tpu7x:2x2x1
jax: 0.10.0
libtpu: 0.0.40
codegen_flags: <defaults>
</compile_context>

<pallas_src>
import functools
import numpy as np

import jax
import jax.numpy as jnp
from jax.experimental import pallas as pl
from jax.experimental.pallas import tpu as pltpu

LN_EPS = 1e-5  # nn.LayerNorm default


def _round_up(x, m):
    return ((x + m - 1) // m) * m


def _default_vmem_limit():
    # Generation-aware scoped-VMEM budget: ~3/4 of physical VMEM (v5e/v6e: 128 MiB,
    # v7x: 64 MiB), capped at 100 MiB.  Falls back to 64 MiB if the query fails.
    try:
        cap = getattr(pltpu.get_tpu_info(), "vmem_capacity_bytes", None)
        if cap:
            return int(min(cap * 3 // 4, 100 * 1024 * 1024))
    except Exception:
        pass
    return 64 * 1024 * 1024


_VMEM_LIMIT = _default_vmem_limit()


# ----------------------------- in-kernel helpers -----------------------------

def _ln(x, w, b, eps=LN_EPS):
    # LayerNorm over the last axis (biased variance, like torch.nn.LayerNorm).
    mu = jnp.mean(x, axis=-1, keepdims=True)
    xc = x - mu
    var = jnp.mean(xc * xc, axis=-1, keepdims=True)
    return xc * jax.lax.rsqrt(var + eps) * w + b


def _erf(x):
    # Abramowitz & Stegun 7.1.26 rational approximation (max abs err ~1.5e-7,
    # i.e. float32-exact).  exp() already lands on the EUP.
    # TODO(synk): switch to a native EUP erf/tanh-GELU once lax.erf lowering in
    # Mosaic is confirmed; kept polynomial here for guaranteed compilation.
    a1, a2, a3, a4, a5 = 0.254829592, -0.284496736, 1.421413741, -1.453152027, 1.061405429
    p = 0.3275911
    ax = jnp.abs(x)
    t = 1.0 / (1.0 + p * ax)
    poly = ((((a5 * t + a4) * t + a3) * t + a2) * t + a1) * t
    y = 1.0 - poly * jnp.exp(-ax * ax)
    return jnp.where(x >= 0, y, -y)


def _gelu(x):
    # exact (erf-based) GELU, matching torch.nn.GELU() default
    return 0.5 * x * (1.0 + _erf(x * 0.7071067811865476))


# ----------------------------- tiled matmul (MXU) -----------------------------

def _mm_bias_kernel(x_ref, w_ref, b_ref, o_ref, acc_ref):
    @pl.when(pl.program_id(2) == 0)
    def _():
        acc_ref[...] = jnp.zeros_like(acc_ref)
    acc_ref[...] += jnp.dot(x_ref[...], w_ref[...], preferred_element_type=jnp.float32)

    @pl.when(pl.program_id(2) == pl.num_programs(2) - 1)
    def _():
        o_ref[...] = (acc_ref[...] + b_ref[...]).astype(o_ref.dtype)


def _mm_kernel(x_ref, w_ref, o_ref, acc_ref):
    @pl.when(pl.program_id(2) == 0)
    def _():
        acc_ref[...] = jnp.zeros_like(acc_ref)
    acc_ref[...] += jnp.dot(x_ref[...], w_ref[...], preferred_element_type=jnp.float32)

    @pl.when(pl.program_id(2) == pl.num_programs(2) - 1)
    def _():
        o_ref[...] = acc_ref[...].astype(o_ref.dtype)


def linear(x, w, b=None, *, tm=256, tn=256, tk=512):
    """(M,K) @ (K,N) [+ b] with canonical MXU tiling; pads to lane/sublane multiples."""
    M, K = x.shape
    K2, N = w.shape
    assert K == K2
    # Tile sizes: clamp to (padded) array extents so tiny shapes stay single-block.
    # Note: on v5e a 128-wide tm/tn matches the 128x128 MXU; 256 is still correct.
    tm_e = min(tm, _round_up(M, 8))
    tn_e = min(tn, _round_up(N, 128))
    tk_e = min(tk, _round_up(K, 128))
    Mp, Np, Kp = _round_up(M, tm_e), _round_up(N, tn_e), _round_up(K, tk_e)

    xp = jnp.pad(x, ((0, Mp - M), (0, Kp - K))) if (Mp, Kp) != (M, K) else x
    wp = jnp.pad(w, ((0, Kp - K), (0, Np - N))) if (Kp, Np) != (K, N) else w

    grid = (Mp // tm_e, Np // tn_e, Kp // tk_e)
    x_spec = pl.BlockSpec((tm_e, tk_e), lambda i, j, k: (i, k))
    w_spec = pl.BlockSpec((tk_e, tn_e), lambda i, j, k: (k, j))
    out_spec = pl.BlockSpec((tm_e, tn_e), lambda i, j, k: (i, j))
    common = dict(
        out_shape=jax.ShapeDtypeStruct((Mp, Np), x.dtype),
        grid=grid,
        out_specs=out_spec,
        scratch_shapes=[pltpu.VMEM((tm_e, tn_e), jnp.float32)],
        compiler_params=pltpu.CompilerParams(
            dimension_semantics=("parallel", "parallel", "arbitrary"),
            vmem_limit_bytes=_VMEM_LIMIT),
    )

    if b is not None:
        bp = jnp.pad(b, (0, Np - N)) if Np != N else b
        b_spec = pl.BlockSpec((1, tn_e), lambda i, j, k: (0, j))
        out = pl.pallas_call(_mm_bias_kernel, in_specs=[x_spec, w_spec, b_spec],
                             **common)(xp, wp, bp.reshape(1, Np))
    else:
        out = pl.pallas_call(_mm_kernel, in_specs=[x_spec, w_spec],
                             **common)(xp, wp)
    return out[:M, :N] if (Mp, Np) != (M, N) else out


# ----------------------------- tiled LayerNorm ---------------------------------

def _layernorm_kernel(x_ref, w_ref, b_ref, o_ref):
    o_ref[...] = _ln(x_ref[...], w_ref[...], b_ref[...]).astype(o_ref.dtype)


def layernorm(x2d, w, b, *, block_rows=512):
    M, D = x2d.shape
    bm = min(block_rows, _round_up(M, 8))
    Mp = _round_up(M, bm)
    xp = jnp.pad(x2d, ((0, Mp - M), (0, 0))) if Mp != M else x2d
    out = pl.pallas_call(
        _layernorm_kernel,
        out_shape=jax.ShapeDtypeStruct((Mp, D), x2d.dtype),
        grid=(Mp // bm,),
        in_specs=[
            pl.BlockSpec((bm, D), lambda i: (i, 0)),
            pl.BlockSpec((1, D), lambda i: (0, 0)),
            pl.BlockSpec((1, D), lambda i: (0, 0)),
        ],
        out_specs=pl.BlockSpec((bm, D), lambda i: (i, 0)),
        compiler_params=pltpu.CompilerParams(
            dimension_semantics=("parallel",),
            vmem_limit_bytes=_VMEM_LIMIT),
    )(xp, w.reshape(1, D), b.reshape(1, D))
    return out[:M] if Mp != M else out


# ----------------------------- fused ViT block stack ---------------------------

def _block_stack_kernel(x_ref, ln1w, ln1b, qkvw, qkvb, projw, projb, g1, g2,
                        ln2w, ln2b, fc1w, fc1b, fc2w, fc2b, o_ref,
                        *, num_heads, scale):
    """One pre-norm ViT layer (grid axis 1) on one batch element (grid axis 0).

    The residual stream lives in o_ref, which is resident across the layer axis
    (output block index independent of layer), so layer l+1 reads layer l's result
    straight out of VMEM while its weights are being auto-prefetched.
    """
    @pl.when(pl.program_id(1) == 0)
    def _():
        o_ref[...] = x_ref[...]

    x = o_ref[0].astype(jnp.float32)          # (N, D) residual stream
    D = x.shape[-1]
    dh = D // num_heads

    # --- attention branch ---
    h = _ln(x, ln1w[0], ln1b[0])
    qkv = jnp.dot(h, qkvw[0], preferred_element_type=jnp.float32) + qkvb[0]
    q = qkv[:, 0:D] * scale
    k = qkv[:, D:2 * D]
    v = qkv[:, 2 * D:3 * D]
    # TODO(synk): batch heads into a single (nh, N, dh) dot_general (pltpu.einshape) and
    # flash/KV-tile for production N on v7x; the statically unrolled per-head loop is kept
    # here because the head-axis relayout has no guaranteed in-kernel lowering path.
    heads = []
    for hd in range(num_heads):
        lo = hd * dh
        qh = q[:, lo:lo + dh]
        kh = k[:, lo:lo + dh]
        vh = v[:, lo:lo + dh]
        s = jax.lax.dot_general(qh, kh, (((1,), (1,)), ((), ())),
                                preferred_element_type=jnp.float32)      # (N, N)
        s = s - jnp.max(s, axis=-1, keepdims=True)
        p = jnp.exp(s)
        # EUP approximate reciprocal: frees the VALU divide for the softmax normalization.
        p = p * pl.reciprocal(jnp.sum(p, axis=-1, keepdims=True), approx=True)
        heads.append(jnp.dot(p, vh, preferred_element_type=jnp.float32))
    attn = jnp.concatenate(heads, axis=-1)                               # (N, D)
    attn = jnp.dot(attn, projw[0], preferred_element_type=jnp.float32) + projb[0]
    x = x + g1[0] * attn

    # --- MLP branch ---
    h2 = _ln(x, ln2w[0], ln2b[0])
    h2 = jnp.dot(h2, fc1w[0], preferred_element_type=jnp.float32) + fc1b[0]
    h2 = _gelu(h2)
    h2 = jnp.dot(h2, fc2w[0], preferred_element_type=jnp.float32) + fc2b[0]
    o_ref[0] = (x + g2[0] * h2).astype(o_ref.dtype)


def transformer_stack(x, p, num_heads, scale):
    """Run a whole stack of ViT blocks in ONE pallas_call, grid=(B, depth)."""
    B, N, D = x.shape
    L = p["qkv_w"].shape[0]
    H = p["fc1_w"].shape[-1]

    def wspec(shape):
        # Per-layer weight slice, auto-prefetched along the layer ("arbitrary") axis.
        return pl.BlockSpec((1,) + shape, lambda b, l: (l,) + (0,) * len(shape))

    kernel = functools.partial(_block_stack_kernel, num_heads=num_heads, scale=scale)
    return pl.pallas_call(
        kernel,
        out_shape=jax.ShapeDtypeStruct((B, N, D), x.dtype),
        grid=(B, L),
        in_specs=[
            pl.BlockSpec((1, N, D), lambda b, l: (b, 0, 0)),   # x (read at layer 0 only)
            wspec((1, D)), wspec((1, D)),                      # ln1 w, b
            wspec((D, 3 * D)), wspec((1, 3 * D)),              # qkv w, b
            wspec((D, D)), wspec((1, D)),                      # proj w, b
            wspec((1, D)), wspec((1, D)),                      # gamma1, gamma2
            wspec((1, D)), wspec((1, D)),                      # ln2 w, b
            wspec((D, H)), wspec((1, H)),                      # fc1 w, b
            wspec((H, D)), wspec((1, D)),                      # fc2 w, b
        ],
        out_specs=pl.BlockSpec((1, N, D), lambda b, l: (b, 0, 0)),
        compiler_params=pltpu.CompilerParams(
            dimension_semantics=("parallel", "arbitrary"),     # batch across TCs, layers sequential
            vmem_limit_bytes=_VMEM_LIMIT),
    )(x,
      p["ln1_w"], p["ln1_b"], p["qkv_w"], p["qkv_b"], p["proj_w"], p["proj_b"],
      p["gamma1"], p["gamma2"], p["ln2_w"], p["ln2_b"],
      p["fc1_w"], p["fc1_b"], p["fc2_w"], p["fc2_b"])


# ----------------------------- model glue -------------------------------------

def sincos_pos_embedding(n_position, d_hid):
    pos = np.arange(n_position)[:, None].astype(np.float64)
    i = np.arange(d_hid)[None, :]
    angle = pos / np.power(10000, 2 * (i // 2) / d_hid)
    table = np.zeros((n_position, d_hid), dtype=np.float32)
    table[:, 0::2] = np.sin(angle[:, 0::2])
    table[:, 1::2] = np.cos(angle[:, 1::2])
    return jnp.asarray(table)


def patch_embed(x, conv_w, conv_b, patch_size, tubelet_size):
    # Conv3d(kernel=stride=(tt,ps,ps)) == linear on flattened patches (c,kt,kh,kw order).
    # TODO(synk): fold this gather into the matmul index_map (pl.Element rows / scalar
    # prefetch) to avoid the XLA-side relayout at production video sizes.
    B, C, T, H, W = x.shape
    tt, ps = tubelet_size, patch_size
    t_, h_, w_ = T // tt, H // ps, W // ps
    patches = x.reshape(B, C, t_, tt, h_, ps, w_, ps)
    patches = patches.transpose(0, 2, 4, 6, 1, 3, 5, 7)        # (B, t, h, w, C, kt, kh, kw)
    patches = patches.reshape(B * t_ * h_ * w_, C * tt * ps * ps)
    D = conv_w.shape[0]
    w2 = conv_w.reshape(D, C * tt * ps * ps).T                  # (P, D)
    out = linear(patches, w2, conv_b)                           # tiled Pallas matmul
    return out.reshape(B, t_ * h_ * w_, D)


def init_block_params(key, dim, mlp_ratio, qkv_bias, init_values):
    hidden = int(dim * mlp_ratio)
    ks = jax.random.split(key, 7)
    nrm = lambda k, s: jax.random.normal(k, s, jnp.float32) * 0.02
    q_bias = nrm(ks[5], (dim,)) if qkv_bias else jnp.zeros((dim,), jnp.float32)
    v_bias = nrm(ks[6], (dim,)) if qkv_bias else jnp.zeros((dim,), jnp.float32)
    # VideoMAE/Marlin attention: qkv bias = cat(q_bias, zeros, v_bias) -> k-bias is zero.
    qkv_b = jnp.concatenate([q_bias, jnp.zeros((dim,), jnp.float32), v_bias])
    gamma = float(init_values) if init_values and init_values > 0 else 1.0
    return dict(
        ln1_w=jnp.ones((1, dim), jnp.float32), ln1_b=jnp.zeros((1, dim), jnp.float32),
        qkv_w=nrm(ks[0], (dim, 3 * dim)), qkv_b=qkv_b.reshape(1, 3 * dim),
        proj_w=nrm(ks[1], (dim, dim)), proj_b=nrm(ks[2], (dim,)).reshape(1, dim),
        gamma1=jnp.full((1, dim), gamma, jnp.float32),
        gamma2=jnp.full((1, dim), gamma, jnp.float32),
        ln2_w=jnp.ones((1, dim), jnp.float32), ln2_b=jnp.zeros((1, dim), jnp.float32),
        fc1_w=nrm(ks[3], (dim, hidden)), fc1_b=jnp.zeros((1, hidden), jnp.float32),
        fc2_w=nrm(ks[4], (hidden, dim)), fc2_b=jnp.zeros((1, dim), jnp.float32),
    )


def stack_blocks(block_list):
    # Stack per-layer params with a leading layer axis so one pallas_call can
    # prefetch layer l+1 weights while layer l computes.
    return jax.tree_util.tree_map(lambda *xs: jnp.stack(xs, axis=0), *block_list)


def init_marlin_params(key, cfg):
    ks = jax.random.split(key, 8)
    C = 3
    De, Dd = cfg["encoder_embed_dim"], cfg["decoder_embed_dim"]
    tt, ps = cfg["tubelet_size"], cfg["patch_size"]
    N = cfg["num_patches"]
    out_dim = C * tt * ps * ps
    nrm = lambda k, s: jax.random.normal(k, s, jnp.float32) * 0.02
    enc_blocks = stack_blocks([
        init_block_params(k, De, cfg["mlp_ratio"], cfg["qkv_bias"], cfg["init_values"])
        for k in jax.random.split(ks[0], cfg["encoder_depth"])])
    dec_blocks = stack_blocks([
        init_block_params(k, Dd, cfg["mlp_ratio"], cfg["qkv_bias"], cfg["init_values"])
        for k in jax.random.split(ks[1], cfg["decoder_depth"])])
    return dict(
        enc=dict(
            conv_w=nrm(ks[2], (De, C, tt, ps, ps)),
            conv_b=jnp.zeros((De,), jnp.float32),
            pos_emb=sincos_pos_embedding(N, De),
            blocks=enc_blocks,
            norm_w=jnp.ones((De,), jnp.float32), norm_b=jnp.zeros((De,), jnp.float32),
        ),
        proj_w=nrm(ks[3], (De, Dd)),  # enc_dec_proj, bias=False
        dec=dict(
            pos_emb=sincos_pos_embedding(N, Dd),
            mask_token=nrm(ks[4], (Dd,)),
            blocks=dec_blocks,
            norm_w=jnp.ones((Dd,), jnp.float32), norm_b=jnp.zeros((Dd,), jnp.float32),
            head_w=nrm(ks[5], (Dd, out_dim)),
            head_b=jnp.zeros((out_dim,), jnp.float32),
        ),
    )


def marlin_forward(params, x, mask_np, cfg):
    """x: (B, 3, T, H, W) float32; mask_np: host bool (B, N), True = visible token."""
    B = x.shape[0]
    N = cfg["num_patches"]
    De, Dd = cfg["encoder_embed_dim"], cfg["decoder_embed_dim"]
    enc_scale = (De // cfg["encoder_num_heads"]) ** -0.5
    dec_scale = (Dd // cfg["decoder_num_heads"]) ** -0.5

    # boolean-mask gather indices (host-side glue; mirrors `emb[mask].view(b,-1,c)`)
    counts = mask_np.sum(axis=1)
    assert np.all(counts == counts[0]), "mask must keep the same #visible tokens per sample"
    vis_idx = np.stack([np.nonzero(mask_np[b])[0] for b in range(B)]).astype(np.int32)
    msk_idx = np.stack([np.nonzero(~mask_np[b])[0] for b in range(B)]).astype(np.int32)
    vis_idx_j = jnp.asarray(vis_idx)
    msk_idx_j = jnp.asarray(msk_idx)

    # ---------------- encoder ----------------
    emb = patch_embed(x, params["enc"]["conv_w"], params["enc"]["conv_b"],
                      cfg["patch_size"], cfg["tubelet_size"])           # (B, N, De)
    emb = emb + params["enc"]["pos_emb"][None]
    emb = jnp.take_along_axis(emb, vis_idx_j[:, :, None], axis=1)        # (B, n_vis, De)
    emb = transformer_stack(emb, params["enc"]["blocks"],
                            cfg["encoder_num_heads"], enc_scale)         # fused layer stack
    n_vis = emb.shape[1]
    emb = layernorm(emb.reshape(B * n_vis, De),
                    params["enc"]["norm_w"], params["enc"]["norm_b"]).reshape(B, n_vis, De)

    # ---------------- enc_dec_proj (Linear, bias=False) ----------------
    z = linear(emb.reshape(B * n_vis, De), params["proj_w"], None).reshape(B, n_vis, Dd)

    # ---------------- decoder ----------------
    pos_d = params["dec"]["pos_emb"]                                     # (N, Dd)
    pos_vis = pos_d[vis_idx_j]                                           # (B, n_vis, Dd)
    pos_msk = pos_d[msk_idx_j]                                           # (B, n_mask, Dd)
    mask_tok = params["dec"]["mask_token"][None, None, :]
    xd = jnp.concatenate([z + pos_vis, mask_tok + pos_msk], axis=1)      # (B, N, Dd)
    xd = transformer_stack(xd, params["dec"]["blocks"],
                           cfg["decoder_num_heads"], dec_scale)
    xn = layernorm(xd.reshape(B * N, Dd), params["dec"]["norm_w"], params["dec"]["norm_b"])
    out = linear(xn, params["dec"]["head_w"], params["dec"]["head_b"])
    return out.reshape(B, N, -1)                                         # (B, N, 3*tt*ps*ps)


# ----------------------------- demo -------------------------------------------

if __name__ == "__main__":
    cfg = dict(
        img_size=16, patch_size=8, n_frames=4, tubelet_size=2,
        encoder_embed_dim=128, encoder_depth=2, encoder_num_heads=4,
        decoder_embed_dim=64, decoder_depth=2, decoder_num_heads=2,
        mlp_ratio=4.0, qkv_bias=True, qk_scale=None, init_values=0.0,
    )
    cfg["num_patches"] = (cfg["n_frames"] // cfg["tubelet_size"]) * (cfg["img_size"] // cfg["patch_size"]) ** 2

    B = 2
    N = cfg["num_patches"]            # 8 tokens
    key = jax.random.PRNGKey(0)
    kx, kp = jax.random.split(key)
    x = jax.random.normal(kx, (B, 3, cfg["n_frames"], cfg["img_size"], cfg["img_size"]), jnp.float32)

    # mask: True = visible token (kept by the encoder); equal count per sample.
    mask = np.zeros((B, N), dtype=bool)
    mask[0, [0, 2, 4, 6]] = True
    mask[1, [1, 3, 5, 7]] = True

    params = init_marlin_params(kp, cfg)
    out = marlin_forward(params, x, mask, cfg)
    out = jax.block_until_ready(out)

    expected = (B, N, 3 * cfg["tubelet_size"] * cfg["patch_size"] ** 2)
    assert out.shape == expected, (out.shape, expected)
    assert bool(jnp.all(jnp.isfinite(out)))
    print("KERNEL_OK")
</pallas_src>

<mosaic_0001>
module attributes {stable_mosaic.version = 11 : i64} {
  func.func @_mm_bias_kernel(%arg0: i32, %arg1: i32, %arg2: i32, %arg3: memref<16x384xf32, #tpu.memory_space<vmem>>, %arg4: memref<384x128xf32, #tpu.memory_space<vmem>>, %arg5: memref<1x128xf32, #tpu.memory_space<vmem>>, %arg6: memref<16x128xf32, #tpu.memory_space<vmem>>, %arg7: memref<16x128xf32, #tpu.memory_space<vmem>>) attributes {dimension_semantics = [#tpu.dimension_semantics<parallel>, #tpu.dimension_semantics<parallel>, #tpu.dimension_semantics<arbitrary>], iteration_bounds = array<i64: 1, 1, 1>, scalar_prefetch = 0 : i64, scratch_operands = 1 : i64, tpu.core_type = #tpu.core_type<tc>, window_params = [{transform_indices = @transform_0, window_bounds = array<i64: 16, 384>}, {transform_indices = @transform_1, window_bounds = array<i64: 384, 128>}, {transform_indices = @transform_2, window_bounds = array<i64: 1, 128>}, {transform_indices = @transform_3, window_bounds = array<i64: 16, 128>}]} {
    %c0_i32 = arith.constant 0 : i32
    %0 = arith.cmpi eq, %arg2, %c0_i32 : i32
    %1 = arith.extui %0 : i1 to i32
    %c0_i32_0 = arith.constant 0 : i32
    %2 = arith.cmpi ne, %1, %c0_i32_0 : i32
    scf.if %2 {
      %cst_10 = arith.constant 0.000000e+00 : f32
      %12 = vector.broadcast %cst_10 : f32 to vector<16x128xf32>
      %c0_11 = arith.constant 0 : index
      %c0_12 = arith.constant 0 : index
      %13 = vector.load %arg7[%c0_11, %c0_12] : memref<16x128xf32, #tpu.memory_space<vmem>>, vector<16x128xf32>
      tpu.vector_store %arg7[%c0_11, %c0_12], %12 {strides = array<i32>} : memref<16x128xf32, #tpu.memory_space<vmem>>, vector<16x128xf32>,
    } else {
    }
    %c0 = arith.constant 0 : index
    %c0_1 = arith.constant 0 : index
    %3 = vector.load %arg7[%c0, %c0_1] : memref<16x128xf32, #tpu.memory_space<vmem>>, vector<16x128xf32>
    %c0_2 = arith.constant 0 : index
    %c0_3 = arith.constant 0 : index
    %4 = vector.load %arg3[%c0_2, %c0_3] : memref<16x384xf32, #tpu.memory_space<vmem>>, vector<16x384xf32>
    %c0_4 = arith.constant 0 : index
    %c0_5 = arith.constant 0 : index
    %5 = vector.load %arg4[%c0_4, %c0_5] : memref<384x128xf32, #tpu.memory_space<vmem>>, vector<384x128xf32>
    %cst = arith.constant dense<0.000000e+00> : vector<16x128xf32>
    %6 = tpu.matmul %4, %5, %cst {dimension_numbers = #tpu.dot_dimension_numbers<[1], [0], [0], [1], [0, 0, 1, 1], [], []>} : vector<16x384xf32>, vector<384x128xf32>, vector<16x128xf32> -> vector<16x128xf32>
    %7 = arith.addf %3, %6 : vector<16x128xf32>
    %c0_6 = arith.constant 0 : index
    %c0_7 = arith.constant 0 : index
    %8 = vector.load %arg7[%c0_6, %c0_7] : memref<16x128xf32, #tpu.memory_space<vmem>>, vector<16x128xf32>
    tpu.vector_store %arg7[%c0_6, %c0_7], %7 {strides = array<i32>} : memref<16x128xf32, #tpu.memory_space<vmem>>, vector<16x128xf32>,
    %c0_i32_8 = arith.constant 0 : i32
    %9 = arith.cmpi eq, %arg2, %c0_i32_8 : i32
    %10 = arith.extui %9 : i1 to i32
    %c0_i32_9 = arith.constant 0 : i32
    %11 = arith.cmpi ne, %10, %c0_i32_9 : i32
    scf.if %11 {
      %c0_10 = arith.constant 0 : index
      %c0_11 = arith.constant 0 : index
      %12 = vector.load %arg7[%c0_10, %c0_11] : memref<16x128xf32, #tpu.memory_space<vmem>>, vector<16x128xf32>
      %c0_12 = arith.constant 0 : index
      %c0_13 = arith.constant 0 : index
      %13 = vector.load %arg5[%c0_12, %c0_13] : memref<1x128xf32, #tpu.memory_space<vmem>>, vector<1x128xf32>
      %14 = vector.broadcast %13 : vector<1x128xf32> to vector<16x128xf32>
      %15 = arith.addf %12, %14 : vector<16x128xf32>
      %c0_14 = arith.constant 0 : index
      %c0_15 = arith.constant 0 : index
      %16 = vector.load %arg6[%c0_14, %c0_15] : memref<16x128xf32, #tpu.memory_space<vmem>>, vector<16x128xf32>
      tpu.vector_store %arg6[%c0_14, %c0_15], %15 {strides = array<i32>} : memref<16x128xf32, #tpu.memory_space<vmem>>, vector<16x128xf32>,
    } else {
    }
    return
  }
  func.func @transform_0(%arg0: i32, %arg1: i32, %arg2: i32) -> (i32, i32) {
    %c0_i32 = arith.constant 0 : i32
    return %arg0, %arg2 : i32, i32
  }
  func.func @transform_1(%arg0: i32, %arg1: i32, %arg2: i32) -> (i32, i32) {
    %c0_i32 = arith.constant 0 : i32
    return %arg2, %arg1 : i32, i32
  }
  func.func @transform_2(%arg0: i32, %arg1: i32, %arg2: i32) -> (i32, i32) {
    %c0_i32 = arith.constant 0 : i32
    %c0_i32_0 = arith.constant 0 : i32
    return %c0_i32, %arg1 : i32, i32
  }
  func.func @transform_3(%arg0: i32, %arg1: i32, %arg2: i32) -> (i32, i32) {
    %c0_i32 = arith.constant 0 : i32
    return %arg0, %arg1 : i32, i32
  }
}

</mosaic_0001>

<llo_original>
// kernel: tpu_custom_call.1
$region0: #{tpu_custom_call.1}
  #allocation0 [shape = 'u32[]', space=smem, size = 0x4, offset = 0x4, fixed_abs, tag = 'smem constant byte address 0x4 - core index']
  #allocation1 [shape = 'u32[144,128]{1,0:T(1,128)}', space=vmem, size = 0x12000, scoped, tag = 'internal scratch']
  #allocation2 [shape = 'f32[16,128]{1,0:T(8,128)}', space=vmem, size = 0x2000, scoped, tag = 'scratch operand']
  %s0 = inlined_call_operand.hbm [shape: f32[16,384], index: 0, kind: input, shape index: {}]
  %s1 = inlined_call_operand.hbm [shape: f32[384,128], index: 1, kind: input, shape index: {}]
  %s2 = inlined_call_operand.hbm [shape: f32[1,128], index: 2, kind: input, shape index: {}]
  %s3 = inlined_call_operand.hbm [shape: f32[16,128], index: 3, kind: output, shape index: {}]
  %s4 = sld [smem:[#allocation0]]
  $region42: #{tpu_custom_call.1} parent=0
    _
  %s6 = ssub.s32 1, %s4
  %s7 = scalar_select 0, %s6, %s4
  $region1: #{tpu_custom_call.1} parent=0
    #allocation3 [shape = 'u8[24576]{0}', space=vmem, size = 0x6000, scoped, tag = 'input window, operand 0, single buffered']
    #allocation4 [shape = 's32[1]{0}', space=sflag, size = 0x4, scoped, tag = 'scoped memory for tpu_custom_call.1']
    #allocation5 [shape = 's32[1]{0}', space=sflag, size = 0x4, scoped, tag = 'scoped memory for tpu_custom_call.1']
    #allocation6 [shape = 'u8[196608]{0}', space=vmem, size = 0x30000, scoped, tag = 'input window, operand 1, single buffered']
    #allocation7 [shape = 's32[1]{0}', space=sflag, size = 0x4, scoped, tag = 'scoped memory for tpu_custom_call.1']
    #allocation8 [shape = 'u8[512]{0}', space=vmem, size = 0x400, scoped, tag = 'input window, operand 2, single buffered']
    #allocation9 [shape = 'u8[8192]{0}', space=vmem, size = 0x2000, scoped, tag = 'output window, operand 0, single buffered']
    %8 = vsyncpa [#allocation4], 0
    %9 = vsyncpa [#allocation7], 0
    %10 = vsyncpa [#allocation5], 0
    // Predicated region
    $region2: #{tpu_custom_call.1} parent=1 // pred_check
      _
    $region3: #{tpu_custom_call.1} parent=1 // pred_check_branch
      %12 = sbr.rel (0) target = $region5
    $region4: #{tpu_custom_call.1} parent=1 // pred_region
      %s14 = ssub.s32 768, 768
      %15 = vsyncadd [#allocation4], %s14
      %s16 = sshll.u32 [#allocation3], 4
      %s17 = int_to_ptr.vmem [resolvable:$true] %s16
      %22 = dma.hbm_to_vmem [thread:$0]  %s0, 768, %s17, [#allocation4], 384, 384, 24
    $region5: #{tpu_custom_call.1} parent=1 // pred_fallthru
      _
    // Predicated region
    $region6: #{tpu_custom_call.1} parent=1 // pred_check
      _
    $region7: #{tpu_custom_call.1} parent=1 // pred_check_branch
      %24 = sbr.rel (0) target = $region9
    $region8: #{tpu_custom_call.1} parent=1 // pred_region
      %s26 = ssub.s32 6144, 6144
      %27 = vsyncadd [#allocation7], %s26
      %s28 = sshll.u32 [#allocation6], 4
      %s29 = int_to_ptr.vmem [resolvable:$true] %s28
      %34 = dma.hbm_to_vmem [thread:$0]  %s1, 6144, %s29, [#allocation7], 128, 128, 8
    $region9: #{tpu_custom_call.1} parent=1 // pred_fallthru
      _
    // Predicated region
    $region10: #{tpu_custom_call.1} parent=1 // pred_check
      _
    $region11: #{tpu_custom_call.1} parent=1 // pred_check_branch
      %36 = sbr.rel (0) target = $region13
    $region12: #{tpu_custom_call.1} parent=1 // pred_region
      %s38 = ssub.s32 16, 16
      %39 = vsyncadd [#allocation7], %s38
      %s41 = sshll.u32 [#allocation8], 4
      %s42 = int_to_ptr.vmem [resolvable:$true] %s41
      %44 = dma.hbm_to_vmem [thread:$0]  %s2, 16, %s42, [#allocation7]
    $region13: #{tpu_custom_call.1} parent=1 // pred_fallthru
      _
    // Predicated region
    $region14: #{tpu_custom_call.1} parent=1 // pred_check
      _
    $region15: #{tpu_custom_call.1} parent=1 // pred_check_branch
      %46 = sbr.rel (0) target = $region17
    $region16: #{tpu_custom_call.1} parent=1 // pred_region
      %47 = dma.done [#allocation4], 768
    $region17: #{tpu_custom_call.1} parent=1 // pred_fallthru
      _
    // Predicated region
    $region18: #{tpu_custom_call.1} parent=1 // pred_check
      _
    $region19: #{tpu_custom_call.1} parent=1 // pred_check_branch
      %49 = sbr.rel (0) target = $region21
    $region20: #{tpu_custom_call.1} parent=1 // pred_region
      %50 = dma.done [#allocation7], 6144
    $region21: #{tpu_custom_call.1} parent=1 // pred_fallthru
      _
    // Predicated region
    $region22: #{tpu_custom_call.1} parent=1 // pred_check
      _
    $region23: #{tpu_custom_call.1} parent=1 // pred_check_branch
      %52 = sbr.rel (0) target = $region25
    $region24: #{tpu_custom_call.1} parent=1 // pred_region
      %53 = dma.done [#allocation7], 16
    $region25: #{tpu_custom_call.1} parent=1 // pred_fallthru
      _
    %p54 = scmp.eq.s32.totalorder 0, 0
    // Predicated region
    $region26: #{tpu_custom_call.1} parent=1 // pred_check
      %p55 = pneg %p54
    $region27: #{tpu_custom_call.1} parent=1 // pred_check_branch
      %57 = sbr.rel (%p55) target = $region29
    $region28: #{tpu_custom_call.1} parent=1 // pred_region
      %58 = vst [vmem:[#allocation2] sm:$0xff] 0.0
      %59 = vst [vmem:[#allocation2 + $0x8] sm:$0xff] 0.0
    $region29: #{tpu_custom_call.1} parent=1 // pred_fallthru
      _
    %v60 = vld [vmem:[#allocation2] sm:$0xff]
    %v61 = vld [vmem:[#allocation2 + $0x8] sm:$0xff]
    %v62 = vld [vmem:[#allocation3] sm:$0xff]
    %v63 = vld [vmem:[#allocation3 + $0x8] sm:$0xff]
    %v64 = vld [vmem:[#allocation3 + $0x10] sm:$0xff]
    %v65 = vld [vmem:[#allocation3 + $0x18] sm:$0xff]
    %v66 = vld [vmem:[#allocation3 + $0x20] sm:$0xff]
    %v67 = vld [vmem:[#allocation3 + $0x28] sm:$0xff]
    %v68 = vld [vmem:[#allocation6] sm:$0xff]
    %v69 = vld [vmem:[#allocation6 + $0x8] sm:$0xff]
    %v70 = vld [vmem:[#allocation6 + $0x10] sm:$0xff]
    %v71 = vld [vmem:[#allocation6 + $0x18] sm:$0xff]
    %v72 = vld [vmem:[#allocation6 + $0x20] sm:$0xff]
    %v73 = vld [vmem:[#allocation6 + $0x28] sm:$0xff]
    %v74 = vld [vmem:[#allocation6 + $0x30] sm:$0xff]
    %v75 = vld [vmem:[#allocation6 + $0x38] sm:$0xff]
    %v76 = vld [vmem:[#allocation6 + $0x40] sm:$0xff]
    %v77 = vld [vmem:[#allocation6 + $0x48] sm:$0xff]
    %v78 = vld [vmem:[#allocation6 + $0x50] sm:$0xff]
    %v79 = vld [vmem:[#allocation6 + $0x58] sm:$0xff]
    %v80 = vld [vmem:[#allocation6 + $0x60] sm:$0xff]
    %v81 = vld [vmem:[#allocation6 + $0x68] sm:$0xff]
    %v82 = vld [vmem:[#allocation6 + $0x70] sm:$0xff]
    %v83 = vld [vmem:[#allocation6 + $0x78] sm:$0xff]
    %v84 = vld [vmem:[#allocation6 + $0x80] sm:$0xff]
    %v85 = vld [vmem:[#allocation6 + $0x88] sm:$0xff]
    %v86 = vld [vmem:[#allocation6 + $0x90] sm:$0xff]
    %v87 = vld [vmem:[#allocation6 + $0x98] sm:$0xff]
    %v88 = vld [vmem:[#allocation6 + $0xa0] sm:$0xff]
    %v89 = vld [vmem:[#allocation6 + $0xa8] sm:$0xff]
    %v90 = vld [vmem:[#allocation6 + $0xb0] sm:$0xff]
    %v91 = vld [vmem:[#allocation6 + $0xb8] sm:$0xff]
    %v92 = vld [vmem:[#allocation6 + $0xc0] sm:$0xff]
    %v93 = vld [vmem:[#allocation6 + $0xc8] sm:$0xff]
    %v94 = vld [vmem:[#allocation6 + $0xd0] sm:$0xff]
    %v95 = vld [vmem:[#allocation6 + $0xd8] sm:$0xff]
    %v96 = vld [vmem:[#allocation6 + $0xe0] sm:$0xff]
    %v97 = vld [vmem:[#allocation6 + $0xe8] sm:$0xff]
    %v98 = vld [vmem:[#allocation6 + $0xf0] sm:$0xff]
    %v99 = vld [vmem:[#allocation6 + $0xf8] sm:$0xff]
    %v100 = vld [vmem:[#allocation6 + $0x100] sm:$0xff]
    %v101 = vld [vmem:[#allocation6 + $0x108] sm:$0xff]
    %v102 = vld [vmem:[#allocation6 + $0x110] sm:$0xff]
    %v103 = vld [vmem:[#allocation6 + $0x118] sm:$0xff]
    %v104 = vld [vmem:[#allocation6 + $0x120] sm:$0xff]
    %v105 = vld [vmem:[#allocation6 + $0x128] sm:$0xff]
    %v106 = vld [vmem:[#allocation6 + $0x130] sm:$0xff]
    %v107 = vld [vmem:[#allocation6 + $0x138] sm:$0xff]
    %v108 = vld [vmem:[#allocation6 + $0x140] sm:$0xff]
    %v109 = vld [vmem:[#allocation6 + $0x148] sm:$0xff]
    %v110 = vld [vmem:[#allocation6 + $0x150] sm:$0xff]
    %v111 = vld [vmem:[#allocation6 + $0x158] sm:$0xff]
    %v112 = vld [vmem:[#allocation6 + $0x160] sm:$0xff]
    %v113 = vld [vmem:[#allocation6 + $0x168] sm:$0xff]
    %v114 = vld [vmem:[#allocation6 + $0x170] sm:$0xff]
    %v115 = vld [vmem:[#allocation6 + $0x178] sm:$0xff]
    %116 = vmatprep.subr.mxu0 0.0
    %117 = vmatpush1.msra.mxu0 %v68
    %118 = vmatprep.subr.mxu0 0.0
    %119 = vmatpush1.msra.mxu0 %v69
    %120 = vmatprep.subr.mxu0 0.0
    %121 = vmatpush1.msra.mxu0 %v70
    %122 = vmatprep.subr.mxu0 0.0
    %123 = vmatpush1.msra.mxu0 %v71
    %124 = vmatprep.subr.mxu0 0.0
    %125 = vmatpush1.msra.mxu0 %v72
    %126 = vmatprep.subr.mxu0 0.0
    %127 = vmatpush1.msra.mxu0 %v73
    %128 = vmatprep.subr.mxu0 0.0
    %129 = vmatpush1.msra.mxu0 %v74
    %130 = vmatprep.subr.mxu0 0.0
    %131 = vmatpush1.msra.mxu0 %v75
    %132 = vmatprep.subr.mxu0 0.0
    %133 = vmatpush1.msra.mxu0 %v76
    %134 = vmatprep.subr.mxu0 0.0
    %135 = vmatpush1.msra.mxu0 %v77
    %136 = vmatprep.subr.mxu0 0.0
    %137 = vmatpush1.msra.mxu0 %v78
    %138 = vmatprep.subr.mxu0 0.0
    %139 = vmatpush1.msra.mxu0 %v79
    %140 = vmatprep.subr.mxu0 0.0
    %141 = vmatpush1.msra.mxu0 %v80
    %142 = vmatprep.subr.mxu0 0.0
    %143 = vmatpush1.msra.mxu0 %v81
    %144 = vmatprep.subr.mxu0 0.0
    %145 = vmatpush1.msra.mxu0 %v82
    %146 = vmatprep.subr.mxu0 0.0
    %147 = vmatpush1.msra.mxu0 %v83
    %148 = vmatprep.subr.mxu0 0.0
    %149 = vmatpush1.msra.mxu0 %v84
    %150 = vmatprep.subr.mxu0 0.0
    %151 = vmatpush1.msra.mxu0 %v85
    %152 = vmatprep.subr.mxu0 0.0
    %153 = vmatpush1.msra.mxu0 %v86
    %154 = vmatprep.subr.mxu0 0.0
    %155 = vmatpush1.msra.mxu0 %v87
    %156 = vmatprep.subr.mxu0 0.0
    %157 = vmatpush1.msra.mxu0 %v88
    %158 = vmatprep.subr.mxu0 0.0
    %159 = vmatpush1.msra.mxu0 %v89
    %160 = vmatprep.subr.mxu0 0.0
    %161 = vmatpush1.msra.mxu0 %v90
    %162 = vmatprep.subr.mxu0 0.0
    %163 = vmatpush1.msra.mxu0 %v91
    %164 = vmatprep.subr.mxu0 0.0
    %165 = vmatpush1.msra.mxu0 %v92
    %166 = vmatprep.subr.mxu0 0.0
    %167 = vmatpush1.msra.mxu0 %v93
    %168 = vmatprep.subr.mxu0 0.0
    %169 = vmatpush1.msra.mxu0 %v94
    %170 = vmatprep.subr.mxu0 0.0
    %171 = vmatpush1.msra.mxu0 %v95
    %172 = vmatprep.subr.mxu0 0.0
    %173 = vmatpush1.msra.mxu0 %v96
    %174 = vmatprep.subr.mxu0 0.0
    %175 = vmatpush1.msra.mxu0 %v97
    %176 = vmatprep.subr.mxu0 0.0
    %177 = vmatpush1.msra.mxu0 %v98
    %178 = vmatprep.subr.mxu0 0.0
    %179 = vmatpush1.msra.mxu0 %v99
    %180 = vmatprep.mubr.f32.mxu0 %v63
    %181 = vmatmul.mubr.f32.gmra.mrb[0].mxu0 %v62
    %v182 = vpop.f32.mrb[0].mxu0
    %v183 = vadd.f32 0.0, %v182
    %v184 = vpop.f32.mrb[0].mxu0
    %185 = vmatprep.mubr.f32.mxu0 %v66
    %186 = vmatmul.mubr.f32.gmra.mrb[0].mxu0 %v65
    %v187 = vpop.f32.mrb[0].mxu0
    %v188 = vadd.f32 0.0, %v187
    %v189 = vpop.f32.mrb[0].mxu0
    %190 = vdwg.mxu0
    %191 = vmatprep.subr.mxu0 0.0
    %192 = vmatpush1.msra.mxu0 %v100
    %193 = vmatprep.subr.mxu0 0.0
    %194 = vmatpush1.msra.mxu0 %v101
    %195 = vmatprep.subr.mxu0 0.0
    %196 = vmatpush1.msra.mxu0 %v102
    %197 = vmatprep.subr.mxu0 0.0
    %198 = vmatpush1.msra.mxu0 %v103
    %199 = vmatprep.subr.mxu0 0.0
    %200 = vmatpush1.msra.mxu0 %v104
    %201 = vmatprep.subr.mxu0 0.0
    %202 = vmatpush1.msra.mxu0 %v105
    %203 = vmatprep.subr.mxu0 0.0
    %204 = vmatpush1.msra.mxu0 %v106
    %205 = vmatprep.subr.mxu0 0.0
    %206 = vmatpush1.msra.mxu0 %v107
    %207 = vmatprep.subr.mxu0 0.0
    %208 = vmatpush1.msra.mxu0 %v108
    %209 = vmatprep.subr.mxu0 0.0
    %210 = vmatpush1.msra.mxu0 %v109
    %211 = vmatprep.subr.mxu0 0.0
    %212 = vmatpush1.msra.mxu0 %v110
    %213 = vmatprep.subr.mxu0 0.0
    %214 = vmatpush1.msra.mxu0 %v111
    %215 = vmatprep.subr.mxu0 0.0
    %216 = vmatpush1.msra.mxu0 %v112
    %217 = vmatprep.subr.mxu0 0.0
    %218 = vmatpush1.msra.mxu0 %v113
    %219 = vmatprep.subr.mxu0 0.0
    %220 = vmatpush1.msra.mxu0 %v114
    %221 = vmatprep.subr.mxu0 0.0
    %222 = vmatpush1.msra.mxu0 %v115
    %223 = vmatprep.subr.mxu0 0.0
    %224 = vmatpush1.msra.mxu0 0.0
    %225 = vmatprep.subr.mxu0 0.0
    %226 = vmatpush1.msra.mxu0 0.0
    %227 = vmatprep.subr.mxu0 0.0
    %228 = vmatpush1.msra.mxu0 0.0
    %229 = vmatprep.subr.mxu0 0.0
    %230 = vmatpush1.msra.mxu0 0.0
    %231 = vmatprep.subr.mxu0 0.0
    %232 = vmatpush1.msra.mxu0 0.0
    %233 = vmatprep.subr.mxu0 0.0
    %234 = vmatpush1.msra.mxu0 0.0
    %235 = vmatprep.subr.mxu0 0.0
    %236 = vmatpush1.msra.mxu0 0.0
    %237 = vmatprep.subr.mxu0 0.0
    %238 = vmatpush1.msra.mxu0 0.0
    %239 = vmatprep.subr.mxu0 0.0
    %240 = vmatpush1.msra.mxu0 0.0
    %241 = vmatprep.subr.mxu0 0.0
    %242 = vmatpush1.msra.mxu0 0.0
    %243 = vmatprep.subr.mxu0 0.0
    %244 = vmatpush1.msra.mxu0 0.0
    %245 = vmatprep.subr.mxu0 0.0
    %246 = vmatpush1.msra.mxu0 0.0
    %247 = vmatprep.subr.mxu0 0.0
    %248 = vmatpush1.msra.mxu0 0.0
    %249 = vmatprep.subr.mxu0 0.0
    %250 = vmatpush1.msra.mxu0 0.0
    %251 = vmatprep.subr.mxu0 0.0
    %252 = vmatpush1.msra.mxu0 0.0
    %253 = vmatprep.subr.mxu0 0.0
    %254 = vmatpush1.msra.mxu0 0.0
    %255 = vmatprep.mubr.f32.mxu0 0.0
    %256 = vmatmul.mubr.f32.gmra.mrb[0].mxu0 %v64
    %v257 = vpop.f32.mrb[0].mxu0
    %v258 = vadd.f32 %v183, %v257
    %v259 = vpop.f32.mrb[0].mxu0
    %260 = vmatprep.mubr.f32.mxu0 0.0
    %261 = vmatmul.mubr.f32.gmra.mrb[0].mxu0 %v67
    %v262 = vpop.f32.mrb[0].mxu0
    %v263 = vadd.f32 %v188, %v262
    %v264 = vpop.f32.mrb[0].mxu0
    %265 = vdwg.mxu0
    %v266 = vadd.f32 %v60, %v258
    %v267 = vadd.f32 %v61, %v263
    %268 = vst [vmem:[#allocation2] sm:$0xff] %v266
    %269 = vst [vmem:[#allocation2 + $0x8] sm:$0xff] %v267
    // Predicated region
    $region30: #{tpu_custom_call.1} parent=1 // pred_check
      %p270 = pneg %p54
    $region31: #{tpu_custom_call.1} parent=1 // pred_check_branch
      %272 = sbr.rel (%p270) target = $region33
    $region32: #{tpu_custom_call.1} parent=1 // pred_region
      %v273 = vld [vmem:[#allocation2] sm:$0xff]
      %v274 = vld [vmem:[#allocation2 + $0x8] sm:$0xff]
      %v275 = vld [vmem:[#allocation8] sm:$0x1]
      %v277 = vlaneseq
      %v278 = vshrl.u32 %v277, 7
      %v279 = vsub.s32 0, %v278
      %v280 = vrot.slane %v275, %v279
      %v282 = vadd.f32 %v273, %v280
      %v283 = vadd.f32 %v274, %v280
      %284 = vst [vmem:[#allocation9] sm:$0xff] %v282
      %285 = vst [vmem:[#allocation9 + $0x8] sm:$0xff] %v283
    $region33: #{tpu_custom_call.1} parent=1 // pred_fallthru
      _
    // Predicated region
    $region34: #{tpu_custom_call.1} parent=1 // pred_check
      _
    $region35: #{tpu_custom_call.1} parent=1 // pred_check_branch
      %287 = sbr.rel (0) target = $region37
    $region36: #{tpu_custom_call.1} parent=1 // pred_region
      %s289 = ssub.s32 256, 256
      %290 = vsyncadd [#allocation5], %s289
      %s291 = sshll.u32 [#allocation9], 4
      %s292 = int_to_ptr.vmem [resolvable:$true] %s291
      %297 = dma.vmem_to_hbm [thread:$0]  %s292, 256, %s3, [#allocation5], 128, 128, 8
    $region37: #{tpu_custom_call.1} parent=1 // pred_fallthru
      _
    // Predicated region
    $region38: #{tpu_custom_call.1} parent=1 // pred_check
      _
    $region39: #{tpu_custom_call.1} parent=1 // pred_check_branch
      %299 = sbr.rel (0) target = $region41
    $region40: #{tpu_custom_call.1} parent=1 // pred_region
      %300 = dma.done [#allocation5], 256
    $region41: #{tpu_custom_call.1} parent=1 // pred_fallthru
      _
    %301 = vsyncpa [#allocation4], 1
    %302 = vsyncpa [#allocation7], 1
    %303 = vsyncpa [#allocation5], 1

</llo_original>
